<compile_context>
chip_gen: v7x
topology: tpu7x:2x2x1
jax: 0.10.0
libtpu: 0.0.40
codegen_flags: <defaults>
</compile_context>

<pallas_src>
import jax
import jax.numpy as jnp
from jax.experimental import pallas as pl
from jax.experimental.pallas import tpu as pltpu

MIN_LOG_STD = -20.0
MAX_LOG_STD = 2.0
HIDDEN = 256
HEAD_ROWS = 8        # transposed fused head: row 0 = mu, row 1 = log_std, rest zero
MAX_TB = 1024        # batch-tile cap (per perf review; grid >= 2 for B > 1024)


def actor_kernel(x_ref, w1_ref, b1_ref, w2_ref, b2_ref, wht_ref, bht_ref, out_ref):
    # fc1 + relu  (bf16 operands, f32 accumulation; elementwise stays f32)
    h1 = jnp.dot(x_ref[...], w1_ref[...],
                 preferred_element_type=jnp.float32) + b1_ref[...]
    h1 = jnp.maximum(h1, 0.0).astype(jnp.bfloat16)                      # [TB, 256]

    # fc2 + relu
    h2 = jnp.dot(h1, w2_ref[...],
                 preferred_element_type=jnp.float32) + b2_ref[...]
    h2 = jnp.maximum(h2, 0.0).astype(jnp.bfloat16)                      # [TB, 256]

    # transposed fused heads: [8, 256] x [TB, 256] contracted on 256 -> [8, TB]
    # (lane axis = batch -> lane-dense, ~16x smaller writeback than a [TB,128] slab)
    heads = jax.lax.dot_general(
        wht_ref[...], h2,
        dimension_numbers=(((1,), (1,)), ((), ())),
        preferred_element_type=jnp.float32) + bht_ref[...]              # [8, TB]

    # row 1 carries log_std: relu then clamp (lower clamp is dead after relu)
    row = jax.lax.broadcasted_iota(jnp.int32, heads.shape, 0)
    ls = jnp.minimum(jnp.maximum(heads, 0.0), MAX_LOG_STD)
    out_ref[...] = jnp.where(row == 1, ls, heads).astype(out_ref.dtype)


def _round_up(n, m):
    return ((n + m - 1) // m) * m


def _choose_tiles(B):
    """Pick (TB, B_pad): TB multiple of 8; multiple of 128 when multi-tile so the
    [8, TB] output block is lane-dense; grid >= 2 whenever B > MAX_TB (v7x 2-TC split)."""
    if B <= MAX_TB:
        TB = _round_up(max(B, 1), 8)
        return TB, TB
    n_tiles = -(-B // MAX_TB)                       # ceil
    TB = _round_up(-(-B // n_tiles), 128)           # balanced, lane-dense tiles
    B_pad = _round_up(B, TB)
    return TB, B_pad


def actor_forward(x, p):
    B, S = x.shape
    TB, B_pad = _choose_tiles(B)

    xb = x.astype(jnp.bfloat16)
    if B_pad != B:
        xb = jnp.pad(xb, ((0, B_pad - B), (0, 0)))

    out = pl.pallas_call(
        actor_kernel,
        out_shape=jax.ShapeDtypeStruct((HEAD_ROWS, B_pad), jnp.float32),
        grid=(B_pad // TB,),
        in_specs=[
            pl.BlockSpec((TB, S), lambda i: (i, 0)),               # x tile (pipelined)
            pl.BlockSpec((S, HIDDEN), lambda i: (0, 0)),           # w1 (VMEM-resident)
            pl.BlockSpec((1, HIDDEN), lambda i: (0, 0)),           # b1
            pl.BlockSpec((HIDDEN, HIDDEN), lambda i: (0, 0)),      # w2
            pl.BlockSpec((1, HIDDEN), lambda i: (0, 0)),           # b2
            pl.BlockSpec((HEAD_ROWS, HIDDEN), lambda i: (0, 0)),   # fused head W^T
            pl.BlockSpec((HEAD_ROWS, 1), lambda i: (0, 0)),        # fused head b
        ],
        out_specs=pl.BlockSpec((HEAD_ROWS, TB), lambda i: (0, i)),
        compiler_params=pltpu.CompilerParams(
            dimension_semantics=("parallel",)),
    )(xb, p["w1"], p["b1"], p["w2"], p["b2"], p["wht"], p["bht"])

    mu = out[0:1, :B].T         # [B, 1]
    log_std = out[1:2, :B].T    # [B, 1]
    return mu, log_std


def init_params(key, state_dim):
    # Deterministic synthetic init (PyTorch-Linear-like uniform bounds), f32 master copy.
    ks = jax.random.split(key, 8)

    def uni(k, shape, fan_in):
        bound = 1.0 / jnp.sqrt(fan_in)
        return jax.random.uniform(k, shape, jnp.float32, -bound, bound)

    return {
        "w1":  uni(ks[0], (state_dim, HIDDEN), state_dim),
        "b1":  uni(ks[1], (1, HIDDEN), state_dim),
        "w2":  uni(ks[2], (HIDDEN, HIDDEN), HIDDEN),
        "b2":  uni(ks[3], (1, HIDDEN), HIDDEN),
        "wmu": uni(ks[4], (HIDDEN, 1), HIDDEN),
        "bmu": uni(ks[5], (1, 1), HIDDEN),
        "wls": uni(ks[6], (HIDDEN, 1), HIDDEN),
        "bls": uni(ks[7], (1, 1), HIDDEN),
    }


def prepare_params(p):
    """bf16 weights + pack the two [256,1] heads as rows of a transposed [8,256] slab."""
    wht = jnp.zeros((HEAD_ROWS, HIDDEN), jnp.float32)
    wht = wht.at[0, :].set(p["wmu"][:, 0]).at[1, :].set(p["wls"][:, 0])
    bht = jnp.zeros((HEAD_ROWS, 1), jnp.float32)
    bht = bht.at[0, 0].set(p["bmu"][0, 0]).at[1, 0].set(p["bls"][0, 0])
    return {
        "w1": p["w1"].astype(jnp.bfloat16),
        "b1": p["b1"],
        "w2": p["w2"].astype(jnp.bfloat16),
        "b2": p["b2"],
        "wht": wht.astype(jnp.bfloat16),
        "bht": bht,
    }


def reference_forward(x, p):
    # Mirrors the kernel's bf16-operand / f32-accumulate numerics.
    bf = jnp.bfloat16
    h1 = jnp.dot(x.astype(bf), p["w1"].astype(bf),
                 preferred_element_type=jnp.float32) + p["b1"]
    h1 = jnp.maximum(h1, 0.0).astype(bf)
    h2 = jnp.dot(h1, p["w2"].astype(bf),
                 preferred_element_type=jnp.float32) + p["b2"]
    h2 = jnp.maximum(h2, 0.0).astype(bf)
    mu = jnp.dot(h2, p["wmu"].astype(bf),
                 preferred_element_type=jnp.float32) + p["bmu"]
    ls = jnp.dot(h2, p["wls"].astype(bf),
                 preferred_element_type=jnp.float32) + p["bls"]
    ls = jnp.clip(jnp.maximum(ls, 0.0), MIN_LOG_STD, MAX_LOG_STD)
    return mu, ls


if __name__ == "__main__":
    B, STATE_DIM = 8, 32
    key = jax.random.PRNGKey(0)
    kx, kp = jax.random.split(key)

    x = jax.random.normal(kx, (B, STATE_DIM), jnp.float32)
    params = init_params(kp, STATE_DIM)
    kernel_params = prepare_params(params)

    mu, log_std = jax.block_until_ready(actor_forward(x, kernel_params))

    mu_ref, ls_ref = reference_forward(x, params)
    assert mu.shape == (B, 1) and log_std.shape == (B, 1)
    assert jnp.allclose(mu, mu_ref, atol=2e-3, rtol=2e-3)
    assert jnp.allclose(log_std, ls_ref, atol=2e-3, rtol=2e-3)

    print("KERNEL_OK")
</pallas_src>

<mosaic_0001>
module attributes {stable_mosaic.version = 11 : i64} {
  func.func @actor_kernel(%arg0: i32, %arg1: memref<8x32xbf16, #tpu.memory_space<vmem>>, %arg2: memref<32x256xbf16, #tpu.memory_space<vmem>>, %arg3: memref<1x256xf32, #tpu.memory_space<vmem>>, %arg4: memref<256x256xbf16, #tpu.memory_space<vmem>>, %arg5: memref<1x256xf32, #tpu.memory_space<vmem>>, %arg6: memref<8x256xbf16, #tpu.memory_space<vmem>>, %arg7: memref<8x1xf32, #tpu.memory_space<vmem>>, %arg8: memref<8x8xf32, #tpu.memory_space<vmem>>) attributes {dimension_semantics = [#tpu.dimension_semantics<parallel>], iteration_bounds = array<i64: 1>, scalar_prefetch = 0 : i64, scratch_operands = 0 : i64, tpu.core_type = #tpu.core_type<tc>, window_params = [{transform_indices = @transform_0, window_bounds = array<i64: 8, 32>}, {pipeline_mode = #tpu.pipeline_mode<synchronous>, transform_indices = @transform_1, window_bounds = array<i64: 32, 256>}, {pipeline_mode = #tpu.pipeline_mode<synchronous>, transform_indices = @transform_2, window_bounds = array<i64: 1, 256>}, {pipeline_mode = #tpu.pipeline_mode<synchronous>, transform_indices = @transform_3, window_bounds = array<i64: 256, 256>}, {pipeline_mode = #tpu.pipeline_mode<synchronous>, transform_indices = @transform_4, window_bounds = array<i64: 1, 256>}, {pipeline_mode = #tpu.pipeline_mode<synchronous>, transform_indices = @transform_5, window_bounds = array<i64: 8, 256>}, {pipeline_mode = #tpu.pipeline_mode<synchronous>, transform_indices = @transform_6, window_bounds = array<i64: 8, 1>}, {transform_indices = @transform_7, window_bounds = array<i64: 8, 8>}]} {
    %c0 = arith.constant 0 : index
    %c0_0 = arith.constant 0 : index
    %0 = vector.load %arg1[%c0, %c0_0] : memref<8x32xbf16, #tpu.memory_space<vmem>>, vector<8x32xbf16>
    %c0_1 = arith.constant 0 : index
    %c0_2 = arith.constant 0 : index
    %1 = vector.load %arg2[%c0_1, %c0_2] : memref<32x256xbf16, #tpu.memory_space<vmem>>, vector<32x256xbf16>
    %cst = arith.constant dense<0.000000e+00> : vector<8x256xf32>
    %2 = tpu.matmul %0, %1, %cst {dimension_numbers = #tpu.dot_dimension_numbers<[1], [0], [0], [1], [0, 0, 1, 1], [], []>} : vector<8x32xbf16>, vector<32x256xbf16>, vector<8x256xf32> -> vector<8x256xf32>
    %c0_3 = arith.constant 0 : index
    %c0_4 = arith.constant 0 : index
    %3 = vector.load %arg3[%c0_3, %c0_4] : memref<1x256xf32, #tpu.memory_space<vmem>>, vector<1x256xf32>
    %4 = vector.broadcast %3 : vector<1x256xf32> to vector<8x256xf32>
    %5 = arith.addf %2, %4 : vector<8x256xf32>
    %cst_5 = arith.constant 0.000000e+00 : f32
    %6 = vector.broadcast %cst_5 : f32 to vector<8x256xf32>
    %7 = arith.maximumf %5, %6 : vector<8x256xf32>
    %8 = arith.truncf %7 : vector<8x256xf32> to vector<8x256xbf16>
    %c0_6 = arith.constant 0 : index
    %c0_7 = arith.constant 0 : index
    %9 = vector.load %arg4[%c0_6, %c0_7] : memref<256x256xbf16, #tpu.memory_space<vmem>>, vector<256x256xbf16>
    %cst_8 = arith.constant dense<0.000000e+00> : vector<8x256xf32>
    %10 = tpu.matmul %8, %9, %cst_8 {dimension_numbers = #tpu.dot_dimension_numbers<[1], [0], [0], [1], [0, 0, 1, 1], [], []>} : vector<8x256xbf16>, vector<256x256xbf16>, vector<8x256xf32> -> vector<8x256xf32>
    %c0_9 = arith.constant 0 : index
    %c0_10 = arith.constant 0 : index
    %11 = vector.load %arg5[%c0_9, %c0_10] : memref<1x256xf32, #tpu.memory_space<vmem>>, vector<1x256xf32>
    %12 = vector.broadcast %11 : vector<1x256xf32> to vector<8x256xf32>
    %13 = arith.addf %10, %12 : vector<8x256xf32>
    %cst_11 = arith.constant 0.000000e+00 : f32
    %14 = vector.broadcast %cst_11 : f32 to vector<8x256xf32>
    %15 = arith.maximumf %13, %14 : vector<8x256xf32>
    %16 = arith.truncf %15 : vector<8x256xf32> to vector<8x256xbf16>
    %c0_12 = arith.constant 0 : index
    %c0_13 = arith.constant 0 : index
    %17 = vector.load %arg6[%c0_12, %c0_13] : memref<8x256xbf16, #tpu.memory_space<vmem>>, vector<8x256xbf16>
    %cst_14 = arith.constant dense<0.000000e+00> : vector<8x8xf32>
    %18 = tpu.matmul %17, %16, %cst_14 {dimension_numbers = #tpu.dot_dimension_numbers<[1], [1], [0], [0], [0, 0, 1, 0], [], []>} : vector<8x256xbf16>, vector<8x256xbf16>, vector<8x8xf32> -> vector<8x8xf32>
    %c0_15 = arith.constant 0 : index
    %c0_16 = arith.constant 0 : index
    %19 = vector.load %arg7[%c0_15, %c0_16] : memref<8x1xf32, #tpu.memory_space<vmem>>, vector<8x1xf32>
    %20 = vector.broadcast %19 : vector<8x1xf32> to vector<8x8xf32>
    %21 = arith.addf %18, %20 : vector<8x8xf32>
    %22 = tpu.iota {dimensions = array<i32: 0>} : vector<8x8xi32>
    %cst_17 = arith.constant 0.000000e+00 : f32
    %23 = vector.broadcast %cst_17 : f32 to vector<8x8xf32>
    %24 = arith.maximumf %21, %23 : vector<8x8xf32>
    %cst_18 = arith.constant 2.000000e+00 : f32
    %25 = vector.broadcast %cst_18 : f32 to vector<8x8xf32>
    %26 = arith.minimumf %24, %25 : vector<8x8xf32>
    %c1_i32 = arith.constant 1 : i32
    %27 = vector.broadcast %c1_i32 : i32 to vector<8x8xi32>
    %28 = arith.cmpi eq, %22, %27 : vector<8x8xi32>
    %29 = arith.select %28, %26, %21 : vector<8x8xi1>, vector<8x8xf32>
    %c0_19 = arith.constant 0 : index
    %c0_20 = arith.constant 0 : index
    %30 = vector.load %arg8[%c0_19, %c0_20] : memref<8x8xf32, #tpu.memory_space<vmem>>, vector<8x8xf32>
    tpu.vector_store %arg8[%c0_19, %c0_20], %29 {strides = array<i32>} : memref<8x8xf32, #tpu.memory_space<vmem>>, vector<8x8xf32>,
    return
  }
  func.func @transform_0(%arg0: i32) -> (i32, i32) {
    %c0_i32 = arith.constant 0 : i32
    %c0_i32_0 = arith.constant 0 : i32
    return %arg0, %c0_i32 : i32, i32
  }
  func.func @transform_1(%arg0: i32) -> (i32, i32) {
    %c0_i32 = arith.constant 0 : i32
    %c0_i32_0 = arith.constant 0 : i32
    %c0_i32_1 = arith.constant 0 : i32
    return %c0_i32, %c0_i32_0 : i32, i32
  }
  func.func @transform_2(%arg0: i32) -> (i32, i32) {
    %c0_i32 = arith.constant 0 : i32
    %c0_i32_0 = arith.constant 0 : i32
    %c0_i32_1 = arith.constant 0 : i32
    return %c0_i32, %c0_i32_0 : i32, i32
  }
  func.func @transform_3(%arg0: i32) -> (i32, i32) {
    %c0_i32 = arith.constant 0 : i32
    %c0_i32_0 = arith.constant 0 : i32
    %c0_i32_1 = arith.constant 0 : i32
    return %c0_i32, %c0_i32_0 : i32, i32
  }
  func.func @transform_4(%arg0: i32) -> (i32, i32) {
    %c0_i32 = arith.constant 0 : i32
    %c0_i32_0 = arith.constant 0 : i32
    %c0_i32_1 = arith.constant 0 : i32
    return %c0_i32, %c0_i32_0 : i32, i32
  }
  func.func @transform_5(%arg0: i32) -> (i32, i32) {
    %c0_i32 = arith.constant 0 : i32
    %c0_i32_0 = arith.constant 0 : i32
    %c0_i32_1 = arith.constant 0 : i32
    return %c0_i32, %c0_i32_0 : i32, i32
  }
  func.func @transform_6(%arg0: i32) -> (i32, i32) {
    %c0_i32 = arith.constant 0 : i32
    %c0_i32_0 = arith.constant 0 : i32
    %c0_i32_1 = arith.constant 0 : i32
    return %c0_i32, %c0_i32_0 : i32, i32
  }
  func.func @transform_7(%arg0: i32) -> (i32, i32) {
    %c0_i32 = arith.constant 0 : i32
    %c0_i32_0 = arith.constant 0 : i32
    return %c0_i32, %arg0 : i32, i32
  }
}

</mosaic_0001>

<llo_original>
// kernel: tpu_custom_call.1
$region0: #{tpu_custom_call.1}
  #allocation0 [shape = 'u32[]', space=smem, size = 0x4, offset = 0x4, fixed_abs, tag = 'smem constant byte address 0x4 - core index']
  #allocation1 [shape = 'u32[144,128]{1,0:T(1,128)}', space=vmem, size = 0x12000, scoped, tag = 'internal scratch']
  %s0 = inlined_call_operand.vmem [shape: bf16[8,32], index: 0, kind: input, shape index: {}]
  %s1 = inlined_call_operand.hbm [shape: bf16[32,256], index: 1, kind: input, shape index: {}]
  %s2 = inlined_call_operand.vmem [shape: f32[1,256], index: 2, kind: input, shape index: {}]
  %s3 = inlined_call_operand.hbm [shape: bf16[256,256], index: 3, kind: input, shape index: {}]
  %s4 = inlined_call_operand.vmem [shape: f32[1,256], index: 4, kind: input, shape index: {}]
  %s5 = inlined_call_operand.vmem [shape: bf16[8,256], index: 5, kind: input, shape index: {}]
  %s6 = inlined_call_operand.vmem [shape: f32[8,1], index: 6, kind: input, shape index: {}]
  %s7 = inlined_call_operand.hbm [shape: f32[8,8], index: 7, kind: output, shape index: {}]
  %s8 = sld [smem:[#allocation0]]
  $region46: #{tpu_custom_call.1} parent=0
    _
  %s10 = ssub.s32 1, %s8
  %s11 = scalar_select 0, %s10, %s8
  $region1: #{tpu_custom_call.1} parent=0
    #allocation2 [shape = 'u8[16384]{0}', space=vmem, size = 0x4000, scoped, tag = 'input window, operand 1, single buffered']
    #allocation3 [shape = 's32[1]{0}', space=sflag, size = 0x4, scoped, tag = 'scoped memory for tpu_custom_call.1']
    #allocation4 [shape = 's32[1]{0}', space=sflag, size = 0x4, scoped, tag = 'scoped memory for tpu_custom_call.1']
    #allocation5 [shape = 'u8[131072]{0}', space=vmem, size = 0x20000, scoped, tag = 'input window, operand 3, single buffered']
    #allocation6 [shape = 's32[1]{0}', space=sflag, size = 0x4, scoped, tag = 'scoped memory for tpu_custom_call.1']
    #allocation7 [shape = 'u8[4096]{0}', space=vmem, size = 0x1000, scoped, tag = 'output window, operand 0, single buffered']
    %12 = vsyncpa [#allocation3], 0
    %13 = vsyncpa [#allocation6], 0
    %14 = vsyncpa [#allocation4], 0
    // Predicated region
    $region2: #{tpu_custom_call.1} parent=1 // pred_check
      _
    $region3: #{tpu_custom_call.1} parent=1 // pred_check_branch
      %16 = sbr.rel (0) target = $region5
    $region4: #{tpu_custom_call.1} parent=1 // pred_region
      _
    $region5: #{tpu_custom_call.1} parent=1 // pred_fallthru
      _
    // Predicated region
    $region6: #{tpu_custom_call.1} parent=1 // pred_check
      _
    $region7: #{tpu_custom_call.1} parent=1 // pred_check_branch
      %18 = sbr.rel (0) target = $region9
    $region8: #{tpu_custom_call.1} parent=1 // pred_region
      %s20 = ssub.s32 512, 512
      %21 = vsyncadd [#allocation3], %s20
      %s22 = sshll.u32 [#allocation2], 4
      %s23 = int_to_ptr.vmem [resolvable:$true] %s22
      %28 = dma.hbm_to_vmem [thread:$0]  %s1, 512, %s23, [#allocation3], 128, 128, 8
    $region9: #{tpu_custom_call.1} parent=1 // pred_fallthru
      _
    // Predicated region
    $region10: #{tpu_custom_call.1} parent=1 // pred_check
      _
    $region11: #{tpu_custom_call.1} parent=1 // pred_check_branch
      %30 = sbr.rel (0) target = $region13
    $region12: #{tpu_custom_call.1} parent=1 // pred_region
      _
    $region13: #{tpu_custom_call.1} parent=1 // pred_fallthru
      _
    // Predicated region
    $region14: #{tpu_custom_call.1} parent=1 // pred_check
      _
    $region15: #{tpu_custom_call.1} parent=1 // pred_check_branch
      %32 = sbr.rel (0) target = $region17
    $region16: #{tpu_custom_call.1} parent=1 // pred_region
      %s34 = ssub.s32 4096, 4096
      %35 = vsyncadd [#allocation6], %s34
      %s36 = sshll.u32 [#allocation5], 4
      %s37 = int_to_ptr.vmem [resolvable:$true] %s36
      %42 = dma.hbm_to_vmem [thread:$0]  %s3, 4096, %s37, [#allocation6], 128, 128, 8
    $region17: #{tpu_custom_call.1} parent=1 // pred_fallthru
      _
    // Predicated region
    $region18: #{tpu_custom_call.1} parent=1 // pred_check
      _
    $region19: #{tpu_custom_call.1} parent=1 // pred_check_branch
      %44 = sbr.rel (0) target = $region21
    $region20: #{tpu_custom_call.1} parent=1 // pred_region
      _
    $region21: #{tpu_custom_call.1} parent=1 // pred_fallthru
      _
    // Predicated region
    $region22: #{tpu_custom_call.1} parent=1 // pred_check
      _
    $region23: #{tpu_custom_call.1} parent=1 // pred_check_branch
      %46 = sbr.rel (0) target = $region25
    $region24: #{tpu_custom_call.1} parent=1 // pred_region
      _
    $region25: #{tpu_custom_call.1} parent=1 // pred_fallthru
      _
    // Predicated region
    $region26: #{tpu_custom_call.1} parent=1 // pred_check
      _
    $region27: #{tpu_custom_call.1} parent=1 // pred_check_branch
      %48 = sbr.rel (0) target = $region29
    $region28: #{tpu_custom_call.1} parent=1 // pred_region
      _
    $region29: #{tpu_custom_call.1} parent=1 // pred_fallthru
      _
    // Predicated region
    $region30: #{tpu_custom_call.1} parent=1 // pred_check
      _
    $region31: #{tpu_custom_call.1} parent=1 // pred_check_branch
      %50 = sbr.rel (0) target = $region33
    $region32: #{tpu_custom_call.1} parent=1 // pred_region
      %51 = dma.done [#allocation3], 512
    $region33: #{tpu_custom_call.1} parent=1 // pred_fallthru
      _
    // Predicated region
    $region34: #{tpu_custom_call.1} parent=1 // pred_check
      _
    $region35: #{tpu_custom_call.1} parent=1 // pred_check_branch
      %53 = sbr.rel (0) target = $region37
    $region36: #{tpu_custom_call.1} parent=1 // pred_region
      %54 = dma.done [#allocation6], 4096
    $region37: #{tpu_custom_call.1} parent=1 // pred_fallthru
      _
    %v56 = vld [vmem:[%s0] sm:$0xf]
    %v57 = vld [vmem:[#allocation2] sm:$0xff]
    %v58 = vld [vmem:[#allocation2 + $0x8] sm:$0xff]
    %v59 = vld [vmem:[#allocation2 + $0x10] sm:$0xff]
    %v60 = vld [vmem:[#allocation2 + $0x18] sm:$0xff]
    %v61 = vld [vmem:[%s2] sm:$0x3]
    %v63 = vlaneseq
    %v64 = vshrl.u32 %v63, 7
    %v65 = vsub.s32 0, %v64
    %v66 = vrot.slane %v61, %v65
    %v67 = vlaneseq
    %v68 = vshrl.u32 %v67, 7
    %v69 = vsub.s32 1, %v68
    %v70 = vrot.slane %v61, %v69
    %v77 = vunpack.c.l.b16 %v57
    %v78 = vunpack.c.h.b16 %v57
    %v79 = vunpack.c.l.b16 %v58
    %v80 = vunpack.c.h.b16 %v58
    %v81 = vunpack.c.l.b16 %v59
    %v82 = vunpack.c.h.b16 %v59
    %v83 = vunpack.c.l.b16 %v60
    %v84 = vunpack.c.h.b16 %v60
    %v85 = vpack.c.b16 %v79, %v77
    %v86 = vpack.c.b16 %v80, %v78
    %v87 = vpack.c.b16 %v83, %v81
    %v88 = vpack.c.b16 %v84, %v82
    %vm93 = vcmask 261120
    %v95 = vsel %vm93, %v56, 0
    %97 = vmatprep.subr.bf16.mxu0 %v86
    %98 = vmatpush1.bf16.msra.mxu0 %v85
    %99 = vmatprep.subr.bf16.mxu0 %v88
    %100 = vmatpush1.bf16.msra.mxu0 %v87
    %101 = vmatprep.subr.bf16.mxu0 0
    %102 = vmatpush1.bf16.msra.mxu0 0
    %103 = vmatprep.subr.bf16.mxu0 0
    %104 = vmatpush1.bf16.msra.mxu0 0
    %105 = vmatprep.subr.bf16.mxu0 0
    %106 = vmatpush1.bf16.msra.mxu0 0
    %107 = vmatprep.subr.bf16.mxu0 0
    %108 = vmatpush1.bf16.msra.mxu0 0
    %109 = vmatprep.subr.bf16.mxu0 0
    %110 = vmatpush1.bf16.msra.mxu0 0
    %111 = vmatprep.subr.bf16.mxu0 0
    %112 = vmatpush1.bf16.msra.mxu0 0
    %113 = vmatprep.subr.bf16.mxu0 0
    %114 = vmatpush1.bf16.msra.mxu0 0
    %115 = vmatprep.subr.bf16.mxu0 0
    %116 = vmatpush1.bf16.msra.mxu0 0
    %117 = vmatprep.subr.bf16.mxu0 0
    %118 = vmatpush1.bf16.msra.mxu0 0
    %119 = vmatprep.subr.bf16.mxu0 0
    %120 = vmatpush1.bf16.msra.mxu0 0
    %121 = vmatprep.subr.bf16.mxu0 0
    %122 = vmatpush1.bf16.msra.mxu0 0
    %123 = vmatprep.subr.bf16.mxu0 0
    %124 = vmatpush1.bf16.msra.mxu0 0
    %125 = vmatprep.subr.bf16.mxu0 0
    %126 = vmatpush1.bf16.msra.mxu0 0
    %127 = vmatprep.subr.bf16.mxu0 0
    %128 = vmatpush1.bf16.msra.mxu0 0
    %129 = vmatprep.mubr.bf16.mxu0 0
    %130 = vmatmul.mubr.bf16.gmra.mrb[0].mxu0 %v95
    %v131 = vpop.f32.mrb[0].mxu0
    %v132 = vadd.f32 %v66, %v131
    %v133 = vpop.f32.mrb[0].mxu0
    %v134 = vadd.f32 %v70, %v133
    %v135 = vpop.f32.mrb[0].mxu0
    %v136 = vpop.f32.mrb[0].mxu0
    %137 = vdwg.mxu0
    %v138 = vmax.f32 %v132, 0.0
    %v139 = vmax.f32 %v134, 0.0
    %v140 = vpack.c.bf16 %v138, %v138
    %v141 = vpack.c.bf16 %v139, %v139
    %v142 = vld [vmem:[#allocation5] sm:$0xff]
    %v143 = vld [vmem:[#allocation5 + $0x8] sm:$0xff]
    %v144 = vld [vmem:[#allocation5 + $0x10] sm:$0xff]
    %v145 = vld [vmem:[#allocation5 + $0x18] sm:$0xff]
    %v146 = vld [vmem:[#allocation5 + $0x20] sm:$0xff]
    %v147 = vld [vmem:[#allocation5 + $0x28] sm:$0xff]
    %v148 = vld [vmem:[#allocation5 + $0x30] sm:$0xff]
    %v149 = vld [vmem:[#allocation5 + $0x38] sm:$0xff]
    %v150 = vld [vmem:[#allocation5 + $0x40] sm:$0xff]
    %v151 = vld [vmem:[#allocation5 + $0x48] sm:$0xff]
    %v152 = vld [vmem:[#allocation5 + $0x50] sm:$0xff]
    %v153 = vld [vmem:[#allocation5 + $0x58] sm:$0xff]
    %v154 = vld [vmem:[#allocation5 + $0x60] sm:$0xff]
    %v155 = vld [vmem:[#allocation5 + $0x68] sm:$0xff]
    %v156 = vld [vmem:[#allocation5 + $0x70] sm:$0xff]
    %v157 = vld [vmem:[#allocation5 + $0x78] sm:$0xff]
    %v158 = vld [vmem:[#allocation5 + $0x80] sm:$0xff]
    %v159 = vld [vmem:[#allocation5 + $0x88] sm:$0xff]
    %v160 = vld [vmem:[#allocation5 + $0x90] sm:$0xff]
    %v161 = vld [vmem:[#allocation5 + $0x98] sm:$0xff]
    %v162 = vld [vmem:[#allocation5 + $0xa0] sm:$0xff]
    %v163 = vld [vmem:[#allocation5 + $0xa8] sm:$0xff]
    %v164 = vld [vmem:[#allocation5 + $0xb0] sm:$0xff]
    %v165 = vld [vmem:[#allocation5 + $0xb8] sm:$0xff]
    %v166 = vld [vmem:[#allocation5 + $0xc0] sm:$0xff]
    %v167 = vld [vmem:[#allocation5 + $0xc8] sm:$0xff]
    %v168 = vld [vmem:[#allocation5 + $0xd0] sm:$0xff]
    %v169 = vld [vmem:[#allocation5 + $0xd8] sm:$0xff]
    %v170 = vld [vmem:[#allocation5 + $0xe0] sm:$0xff]
    %v171 = vld [vmem:[#allocation5 + $0xe8] sm:$0xff]
    %v172 = vld [vmem:[#allocation5 + $0xf0] sm:$0xff]
    %v173 = vld [vmem:[#allocation5 + $0xf8] sm:$0xff]
    %v174 = vld [vmem:[%s4] sm:$0x3]
    %v176 = vlaneseq
    %v177 = vshrl.u32 %v176, 7
    %v178 = vsub.s32 0, %v177
    %v179 = vrot.slane %v174, %v178
    %v180 = vlaneseq
    %v181 = vshrl.u32 %v180, 7
    %v182 = vsub.s32 1, %v181
    %v183 = vrot.slane %v174, %v182
    %v218 = vunpack.c.l.b16 %v142
    %v219 = vunpack.c.h.b16 %v142
    %v220 = vunpack.c.l.b16 %v143
    %v221 = vunpack.c.h.b16 %v143
    %v222 = vunpack.c.l.b16 %v144
    %v223 = vunpack.c.h.b16 %v144
    %v224 = vunpack.c.l.b16 %v145
    %v225 = vunpack.c.h.b16 %v145
    %v226 = vunpack.c.l.b16 %v146
    %v227 = vunpack.c.h.b16 %v146
    %v228 = vunpack.c.l.b16 %v147
    %v229 = vunpack.c.h.b16 %v147
    %v230 = vunpack.c.l.b16 %v148
    %v231 = vunpack.c.h.b16 %v148
    %v232 = vunpack.c.l.b16 %v149
    %v233 = vunpack.c.h.b16 %v149
    %v234 = vunpack.c.l.b16 %v150
    %v235 = vunpack.c.h.b16 %v150
    %v236 = vunpack.c.l.b16 %v151
    %v237 = vunpack.c.h.b16 %v151
    %v238 = vunpack.c.l.b16 %v152
    %v239 = vunpack.c.h.b16 %v152
    %v240 = vunpack.c.l.b16 %v153
    %v241 = vunpack.c.h.b16 %v153
    %v242 = vunpack.c.l.b16 %v154
    %v243 = vunpack.c.h.b16 %v154
    %v244 = vunpack.c.l.b16 %v155
    %v245 = vunpack.c.h.b16 %v155
    %v246 = vunpack.c.l.b16 %v156
    %v247 = vunpack.c.h.b16 %v156
    %v248 = vunpack.c.l.b16 %v157
    %v249 = vunpack.c.h.b16 %v157
    %v250 = vunpack.c.l.b16 %v158
    %v251 = vunpack.c.h.b16 %v158
    %v252 = vunpack.c.l.b16 %v159
    %v253 = vunpack.c.h.b16 %v159
    %v254 = vunpack.c.l.b16 %v160
    %v255 = vunpack.c.h.b16 %v160
    %v256 = vunpack.c.l.b16 %v161
    %v257 = vunpack.c.h.b16 %v161
    %v258 = vunpack.c.l.b16 %v162
    %v259 = vunpack.c.h.b16 %v162
    %v260 = vunpack.c.l.b16 %v163
    %v261 = vunpack.c.h.b16 %v163
    %v262 = vunpack.c.l.b16 %v164
    %v263 = vunpack.c.h.b16 %v164
    %v264 = vunpack.c.l.b16 %v165
    %v265 = vunpack.c.h.b16 %v165
    %v266 = vunpack.c.l.b16 %v166
    %v267 = vunpack.c.h.b16 %v166
    %v268 = vunpack.c.l.b16 %v167
    %v269 = vunpack.c.h.b16 %v167
    %v270 = vunpack.c.l.b16 %v168
    %v271 = vunpack.c.h.b16 %v168
    %v272 = vunpack.c.l.b16 %v169
    %v273 = vunpack.c.h.b16 %v169
    %v274 = vunpack.c.l.b16 %v170
    %v275 = vunpack.c.h.b16 %v170
    %v276 = vunpack.c.l.b16 %v171
    %v277 = vunpack.c.h.b16 %v171
    %v278 = vunpack.c.l.b16 %v172
    %v279 = vunpack.c.h.b16 %v172
    %v280 = vunpack.c.l.b16 %v173
    %v281 = vunpack.c.h.b16 %v173
    %v282 = vpack.c.b16 %v220, %v218
    %v283 = vpack.c.b16 %v221, %v219
    %v284 = vpack.c.b16 %v224, %v222
    %v285 = vpack.c.b16 %v225, %v223
    %v286 = vpack.c.b16 %v228, %v226
    %v287 = vpack.c.b16 %v229, %v227
    %v288 = vpack.c.b16 %v232, %v230
    %v289 = vpack.c.b16 %v233, %v231
    %v290 = vpack.c.b16 %v236, %v234
    %v291 = vpack.c.b16 %v237, %v235
    %v292 = vpack.c.b16 %v240, %v238
    %v293 = vpack.c.b16 %v241, %v239
    %v294 = vpack.c.b16 %v244, %v242
    %v295 = vpack.c.b16 %v245, %v243
    %v296 = vpack.c.b16 %v248, %v246
    %v297 = vpack.c.b16 %v249, %v247
    %v298 = vpack.c.b16 %v252, %v250
    %v299 = vpack.c.b16 %v253, %v251
    %v300 = vpack.c.b16 %v256, %v254
    %v301 = vpack.c.b16 %v257, %v255
    %v302 = vpack.c.b16 %v260, %v258
    %v303 = vpack.c.b16 %v261, %v259
    %v304 = vpack.c.b16 %v264, %v262
    %v305 = vpack.c.b16 %v265, %v263
    %v306 = vpack.c.b16 %v268, %v266
    %v307 = vpack.c.b16 %v269, %v267
    %v308 = vpack.c.b16 %v272, %v270
    %v309 = vpack.c.b16 %v273, %v271
    %v310 = vpack.c.b16 %v276, %v274
    %v311 = vpack.c.b16 %v277, %v275
    %v312 = vpack.c.b16 %v280, %v278
    %v313 = vpack.c.b16 %v281, %v279
    %346 = vmatprep.subr.bf16.mxu0 %v283
    %347 = vmatpush1.bf16.msra.mxu0 %v282
    %348 = vmatprep.subr.bf16.mxu0 %v285
    %349 = vmatpush1.bf16.msra.mxu0 %v284
    %350 = vmatprep.subr.bf16.mxu0 %v287
    %351 = vmatpush1.bf16.msra.mxu0 %v286
    %352 = vmatprep.subr.bf16.mxu0 %v289
    %353 = vmatpush1.bf16.msra.mxu0 %v288
    %354 = vmatprep.subr.bf16.mxu0 %v291
    %355 = vmatpush1.bf16.msra.mxu0 %v290
    %356 = vmatprep.subr.bf16.mxu0 %v293
    %357 = vmatpush1.bf16.msra.mxu0 %v292
    %358 = vmatprep.subr.bf16.mxu0 %v295
    %359 = vmatpush1.bf16.msra.mxu0 %v294
    %360 = vmatprep.subr.bf16.mxu0 %v297
    %361 = vmatpush1.bf16.msra.mxu0 %v296
    %362 = vmatprep.subr.bf16.mxu0 %v299
    %363 = vmatpush1.bf16.msra.mxu0 %v298
    %364 = vmatprep.subr.bf16.mxu0 %v301
    %365 = vmatpush1.bf16.msra.mxu0 %v300
    %366 = vmatprep.subr.bf16.mxu0 %v303
    %367 = vmatpush1.bf16.msra.mxu0 %v302
    %368 = vmatprep.subr.bf16.mxu0 %v305
    %369 = vmatpush1.bf16.msra.mxu0 %v304
    %370 = vmatprep.subr.bf16.mxu0 %v307
    %371 = vmatpush1.bf16.msra.mxu0 %v306
    %372 = vmatprep.subr.bf16.mxu0 %v309
    %373 = vmatpush1.bf16.msra.mxu0 %v308
    %374 = vmatprep.subr.bf16.mxu0 %v311
    %375 = vmatpush1.bf16.msra.mxu0 %v310
    %376 = vmatprep.subr.bf16.mxu0 %v313
    %377 = vmatpush1.bf16.msra.mxu0 %v312
    %378 = vmatprep.mubr.bf16.mxu0 %v141
    %379 = vmatmul.mubr.bf16.gmra.mrb[0].mxu0 %v140
    %v380 = vpop.f32.mrb[0].mxu0
    %v381 = vadd.f32 %v179, %v380
    %v382 = vpop.f32.mrb[0].mxu0
    %v383 = vadd.f32 %v183, %v382
    %v384 = vpop.f32.mrb[0].mxu0
    %v385 = vpop.f32.mrb[0].mxu0
    %386 = vdwg.mxu0
    %v387 = vmax.f32 %v381, 0.0
    %v388 = vmax.f32 %v383, 0.0
    %v389 = vpack.c.bf16 %v387, %v387
    %v390 = vpack.c.bf16 %v388, %v388
    %v391 = vld [vmem:[%s5] sm:$0xff]
    %v392 = vld [vmem:[%s6] sm:$0xff]
    %394 = vset.pattern.permute.xlu0 0
    %395 = vperm.xlu0 %394, %v392
    %v396 = vpop.permute.xlu0 %395
    %v399 = vunpack.c.l.b16 %v391
    %v400 = vunpack.c.h.b16 %v391
    %v401 = vpack.c.b16 %v399, %v399
    %v402 = vpack.c.b16 %v400, %v400
    %405 = vmatprep.subr.bf16.mxu0 %v390
    %406 = vmatpush1.bf16.xpose.msra.mxu0 %v389
    %407 = vmatprep.subr.bf16.mxu0 0
    %408 = vmatpush1.bf16.xpose.msra.mxu0 0
    %409 = vmatprep.subr.bf16.mxu0 0
    %410 = vmatpush1.bf16.xpose.msra.mxu0 0
    %411 = vmatprep.subr.bf16.mxu0 0
    %412 = vmatpush1.bf16.xpose.msra.mxu0 0
    %413 = vmatprep.subr.bf16.mxu0 0
    %414 = vmatpush1.bf16.xpose.msra.mxu0 0
    %415 = vmatprep.subr.bf16.mxu0 0
    %416 = vmatpush1.bf16.xpose.msra.mxu0 0
    %417 = vmatprep.subr.bf16.mxu0 0
    %418 = vmatpush1.bf16.xpose.msra.mxu0 0
    %419 = vmatprep.subr.bf16.mxu0 0
    %420 = vmatpush1.bf16.xpose.msra.mxu0 0
    %421 = vmatprep.subr.bf16.mxu0 0
    %422 = vmatpush1.bf16.xpose.msra.mxu0 0
    %423 = vmatprep.subr.bf16.mxu0 0
    %424 = vmatpush1.bf16.xpose.msra.mxu0 0
    %425 = vmatprep.subr.bf16.mxu0 0
    %426 = vmatpush1.bf16.xpose.msra.mxu0 0
    %427 = vmatprep.subr.bf16.mxu0 0
    %428 = vmatpush1.bf16.xpose.msra.mxu0 0
    %429 = vmatprep.subr.bf16.mxu0 0
    %430 = vmatpush1.bf16.xpose.msra.mxu0 0
    %431 = vmatprep.subr.bf16.mxu0 0
    %432 = vmatpush1.bf16.xpose.msra.mxu0 0
    %433 = vmatprep.subr.bf16.mxu0 0
    %434 = vmatpush1.bf16.xpose.msra.mxu0 0
    %435 = vmatprep.subr.bf16.mxu0 0
    %436 = vmatpush1.bf16.xpose.msra.mxu0 0
    %437 = vmatprep.mubr.bf16.mxu0 %v402
    %438 = vmatmul.mubr.bf16.gmra.mrb[0].mxu0 %v401
    %v439 = vpop.f32.mrb[0].mxu0
    %v440 = vadd.f32 %v396, %v439
    %v441 = vpop.f32.mrb[0].mxu0
    %v442 = vpop.f32.mrb[0].mxu0
    %v443 = vpop.f32.mrb[0].mxu0
    %444 = vdwg.mxu0
    %v445 = vlaneseq
    %v446 = vshrl.u32 %v445, 7
    %v447 = vmax.f32 %v440, 0.0
    %v448 = vmin.f32 %v447, 2.0
    %vm449 = vcmp.eq.s32.totalorder %v446, 1
    %v450 = vsel %vm449, %v448, %v440
    %vm451 = vcmask 64512
    %452 = vst.msk [vmem:[#allocation7] sm:$0xff] %vm451, %v450
    // Predicated region
    $region38: #{tpu_custom_call.1} parent=1 // pred_check
      _
    $region39: #{tpu_custom_call.1} parent=1 // pred_check_branch
      %454 = sbr.rel (0) target = $region41
    $region40: #{tpu_custom_call.1} parent=1 // pred_region
      %s456 = ssub.s32 128, 128
      %457 = vsyncadd [#allocation4], %s456
      %s459 = sshll.u32 [#allocation7], 4
      %s460 = int_to_ptr.vmem [resolvable:$true] %s459
      %462 = dma.vmem_to_hbm [thread:$0]  %s460, 128, %s7, [#allocation4]
    $region41: #{tpu_custom_call.1} parent=1 // pred_fallthru
      _
    // Predicated region
    $region42: #{tpu_custom_call.1} parent=1 // pred_check
      _
    $region43: #{tpu_custom_call.1} parent=1 // pred_check_branch
      %464 = sbr.rel (0) target = $region45
    $region44: #{tpu_custom_call.1} parent=1 // pred_region
      %465 = dma.done [#allocation4], 128
    $region45: #{tpu_custom_call.1} parent=1 // pred_fallthru
      _
    %466 = vsyncpa [#allocation3], 1
    %467 = vsyncpa [#allocation6], 1
    %468 = vsyncpa [#allocation4], 1

</llo_original>
